<compile_context>
chip_gen: v7x
topology: tpu7x:2x2x1
jax: 0.10.0
libtpu: 0.0.40
codegen_flags: <defaults>
</compile_context>

<pallas_src>
import functools

import jax
import jax.numpy as jnp
from jax.experimental import pallas as pl
from jax.experimental.pallas import tpu as pltpu


def _gated_sae_kernel(l1_coefficient,
                      x_ref, y_ref, wenc_ref, wdec_ref,
                      rmag_ref, bmag_ref, bgate_ref, bdec_ref,
                      sae_out_ref, loss_ref,
                      acc_ref, sp_ref):
    """One grid step processes one d_sae tile of width TK.

    acc_ref : VMEM [2B, d_in] f32. Rows [0:B]  accumulate hidden_post @ W_dec,
              rows [B:2B] accumulate relu(hidden_pre_gate) @ W_dec.
    sp_ref  : VMEM [1, TK] f32. Per-lane partial sums for the L1 term.
    """
    k = pl.program_id(0)
    nk = pl.num_programs(0)

    @pl.when(k == 0)
    def _init():
        acc_ref[...] = jnp.zeros_like(acc_ref)
        sp_ref[...] = jnp.zeros_like(sp_ref)

    # Encoder matmul for this d_sae tile: bf16 inputs, f32 accumulation.
    hidden_pre = jnp.dot(x_ref[...], wenc_ref[...],
                         preferred_element_type=jnp.float32)      # [B, TK] f32

    r_mag = rmag_ref[...]    # [1, TK] f32
    b_mag = bmag_ref[...]    # [1, TK] f32
    b_gate = bgate_ref[...]  # [1, TK] f32

    # Magnitude path.
    hidden_pre_mag = hidden_pre * jnp.exp(r_mag) + b_mag
    hidden_post_mag = jnp.maximum(hidden_pre_mag, 0.0)

    # Gate path. gate = (sign(z)+1)/2 fused into selects; the exact-zero case
    # (gate == 0.5, matching torch.sign) is preserved.
    hidden_pre_gate = hidden_pre + b_gate
    via_gate = jnp.maximum(hidden_pre_gate, 0.0)
    hidden_post = jnp.where(
        hidden_pre_gate > 0.0, hidden_post_mag,
        jnp.where(hidden_pre_gate < 0.0, 0.0, 0.5 * hidden_post_mag))

    # L1 partials: sublane-reduce now, scalar-reduce only at the final step.
    sp_ref[...] += jnp.sum(via_gate, axis=0, keepdims=True)

    # Fused decoder matmul: one pass over this W_dec row-block computes both
    # the sae_out contribution and the aux-reconstruction contribution.
    lhs = jnp.concatenate([hidden_post, via_gate], axis=0).astype(jnp.bfloat16)
    acc_ref[...] += jnp.dot(lhs, wdec_ref[...],
                            preferred_element_type=jnp.float32)   # [2B, d_in]

    @pl.when(k == nk - 1)
    def _finalize():
        two_b, d_in = acc_ref.shape
        b = two_b // 2

        b_dec = bdec_ref[...]                        # [1, d_in] f32
        y = y_ref[...]                               # [B, d_in] f32
        acc = acc_ref[...]

        sae_out = acc[:b] + b_dec
        via_recon = acc[b:] + b_dec
        sae_out_ref[...] = sae_out.astype(sae_out_ref.dtype)

        inv_bd = 1.0 / float(b * d_in)
        diff = sae_out - y
        mse_loss = jnp.sum(diff * diff) * inv_bd     # mean over B*d_in

        adiff = via_recon - y
        aux_loss = jnp.sum(adiff * adiff) * inv_bd   # mean over B*d_in

        sparsity = jnp.sum(sp_ref[...]) * (1.0 / float(b))  # mean_B sum_d_sae
        l1_loss = l1_coefficient * sparsity

        total = mse_loss + l1_loss + aux_loss
        loss_ref[...] = jnp.full((1, 1), total, dtype=loss_ref.dtype)


def _pick_tile(d_sae):
    for cand in (512, 256, 128):
        if d_sae % cand == 0:
            return cand
    return d_sae


def gated_sae_forward(x_act, y_error, params, l1_coefficient=0.01, tk=None):
    B, d_in = x_act.shape
    d_sae = params["W_enc"].shape[1]
    if tk is None:
        tk = _pick_tile(d_sae)
    assert d_sae % tk == 0, "d_sae must be a multiple of the d_sae tile size"
    nk = d_sae // tk

    # bf16 for the bandwidth-dominant MXU operands; f32 elsewhere.
    x_bf = x_act.astype(jnp.bfloat16)
    w_enc = params["W_enc"].astype(jnp.bfloat16)
    w_dec = params["W_dec"].astype(jnp.bfloat16)

    kernel = functools.partial(_gated_sae_kernel, float(l1_coefficient))

    sae_out, loss = pl.pallas_call(
        kernel,
        out_shape=(
            jax.ShapeDtypeStruct((B, d_in), jnp.float32),
            jax.ShapeDtypeStruct((1, 1), jnp.float32),
        ),
        grid=(nk,),
        in_specs=[
            pl.BlockSpec((B, d_in), lambda k: (0, 0)),   # x (bf16), resident
            pl.BlockSpec((B, d_in), lambda k: (0, 0)),   # y (f32), resident
            pl.BlockSpec((d_in, tk), lambda k: (0, k)),  # W_enc column block
            pl.BlockSpec((tk, d_in), lambda k: (k, 0)),  # W_dec row block
            pl.BlockSpec((1, tk), lambda k: (0, k)),     # r_mag tile
            pl.BlockSpec((1, tk), lambda k: (0, k)),     # b_mag tile
            pl.BlockSpec((1, tk), lambda k: (0, k)),     # b_gate tile
            pl.BlockSpec((1, d_in), lambda k: (0, 0)),   # b_dec, resident
        ],
        out_specs=(
            pl.BlockSpec((B, d_in), lambda k: (0, 0)),   # sae_out (last step)
            pl.BlockSpec((1, 1), lambda k: (0, 0)),      # scalar loss (once)
        ),
        scratch_shapes=[
            pltpu.VMEM((2 * B, d_in), jnp.float32),      # fused output accumulator
            pltpu.VMEM((1, tk), jnp.float32),            # L1 partial sums
        ],
        compiler_params=pltpu.CompilerParams(
            # The d_sae axis is a reduction into the accumulators -> arbitrary.
            dimension_semantics=("arbitrary",),
            # Above the 16/32 MiB scoped default, safely under v7x's 64 MiB.
            vmem_limit_bytes=48 * 1024 * 1024,
        ),
    )(
        x_bf, y_error.astype(jnp.float32),
        w_enc, w_dec,
        params["r_mag"].reshape(1, d_sae).astype(jnp.float32),
        params["b_mag"].reshape(1, d_sae).astype(jnp.float32),
        params["b_gate"].reshape(1, d_sae).astype(jnp.float32),
        params["b_dec"].reshape(1, d_in).astype(jnp.float32),
    )
    return sae_out, loss[0, 0]


def init_params(key, d_in, d_sae):
    """Deterministic kaiming-uniform-style init (matches shapes in __init__)."""
    k_enc, k_dec = jax.random.split(key)
    bound_enc = jnp.sqrt(6.0 / d_in)
    bound_dec = jnp.sqrt(6.0 / d_sae)
    return {
        "W_enc": jax.random.uniform(k_enc, (d_in, d_sae), jnp.float32,
                                    -bound_enc, bound_enc),
        "W_dec": jax.random.uniform(k_dec, (d_sae, d_in), jnp.float32,
                                    -bound_dec, bound_dec),
        "r_mag": jnp.zeros((d_sae,), jnp.float32),
        "b_mag": jnp.zeros((d_sae,), jnp.float32),
        "b_gate": jnp.zeros((d_sae,), jnp.float32),
        "b_dec": jnp.zeros((d_in,), jnp.float32),
    }


def _reference_forward(x_act, y_error, params, l1_coefficient=0.01):
    """Pure-JAX reference with the same bf16 rounding of x / W applied
    (f32 math otherwise), matching the kernel's quantization choice."""
    x = x_act.astype(jnp.bfloat16).astype(jnp.float32)
    w_enc = params["W_enc"].astype(jnp.bfloat16).astype(jnp.float32)
    w_dec = params["W_dec"].astype(jnp.bfloat16).astype(jnp.float32)

    hp = x @ w_enc
    hpm = hp * jnp.exp(params["r_mag"]) + params["b_mag"]
    hpost_mag = jnp.maximum(hpm, 0.0)
    hpg = hp + params["b_gate"]
    hpost_gate = (jnp.sign(hpg) + 1.0) / 2.0
    hpost = hpost_mag * hpost_gate
    sae_out = hpost @ w_dec + params["b_dec"]
    mse = jnp.mean((sae_out - y_error) ** 2)
    via = jnp.maximum(hpg, 0.0)
    l1 = l1_coefficient * jnp.mean(jnp.sum(via, axis=1))
    recon = via @ w_dec + params["b_dec"]
    aux = jnp.mean((recon - y_error) ** 2)
    return sae_out, mse + l1 + aux


if __name__ == "__main__":
    # Small shapes consistent with [batch, d_in] inputs; d_sae tiled by 128
    # (8 grid steps) so the weight-streaming pipeline is actually exercised.
    B, d_in, d_sae = 8, 256, 1024
    key = jax.random.PRNGKey(0)
    kx, ky, kp = jax.random.split(key, 3)
    x_act = jax.random.normal(kx, (B, d_in), jnp.float32)
    y_error = jax.random.normal(ky, (B, d_in), jnp.float32)
    params = init_params(kp, d_in, d_sae)

    sae_out, loss = gated_sae_forward(x_act, y_error, params, tk=128)
    jax.block_until_ready((sae_out, loss))

    ref_out, ref_loss = _reference_forward(x_act, y_error, params)
    # Tolerances account for the bf16 re-cast of the decoder LHS inside the
    # kernel and for differing accumulation order.
    assert jnp.allclose(sae_out, ref_out, atol=2e-2, rtol=2e-2), "sae_out mismatch"
    assert jnp.allclose(loss, ref_loss, atol=5e-2, rtol=2e-2), "loss mismatch"

    print("KERNEL_OK")
</pallas_src>

<mosaic_0001>
module attributes {stable_mosaic.version = 11 : i64} {
  func.func @_gated_sae_kernel(%arg0: i32, %arg1: memref<8x256xbf16, #tpu.memory_space<vmem>>, %arg2: memref<8x256xf32, #tpu.memory_space<vmem>>, %arg3: memref<256x128xbf16, #tpu.memory_space<vmem>>, %arg4: memref<128x256xbf16, #tpu.memory_space<vmem>>, %arg5: memref<1x128xf32, #tpu.memory_space<vmem>>, %arg6: memref<1x128xf32, #tpu.memory_space<vmem>>, %arg7: memref<1x128xf32, #tpu.memory_space<vmem>>, %arg8: memref<1x256xf32, #tpu.memory_space<vmem>>, %arg9: memref<8x256xf32, #tpu.memory_space<vmem>>, %arg10: memref<1x1xf32, #tpu.memory_space<vmem>>, %arg11: memref<16x256xf32, #tpu.memory_space<vmem>>, %arg12: memref<1x128xf32, #tpu.memory_space<vmem>>) attributes {dimension_semantics = [#tpu.dimension_semantics<arbitrary>], iteration_bounds = array<i64: 8>, scalar_prefetch = 0 : i64, scratch_operands = 2 : i64, tpu.core_type = #tpu.core_type<tc>, window_params = [{pipeline_mode = #tpu.pipeline_mode<synchronous>, transform_indices = @transform_0, window_bounds = array<i64: 8, 256>}, {pipeline_mode = #tpu.pipeline_mode<synchronous>, transform_indices = @transform_1, window_bounds = array<i64: 8, 256>}, {transform_indices = @transform_2, window_bounds = array<i64: 256, 128>}, {transform_indices = @transform_3, window_bounds = array<i64: 128, 256>}, {transform_indices = @transform_4, window_bounds = array<i64: 1, 128>}, {transform_indices = @transform_5, window_bounds = array<i64: 1, 128>}, {transform_indices = @transform_6, window_bounds = array<i64: 1, 128>}, {pipeline_mode = #tpu.pipeline_mode<synchronous>, transform_indices = @transform_7, window_bounds = array<i64: 1, 256>}, {pipeline_mode = #tpu.pipeline_mode<synchronous>, transform_indices = @transform_8, window_bounds = array<i64: 8, 256>}, {pipeline_mode = #tpu.pipeline_mode<synchronous>, transform_indices = @transform_9, window_bounds = array<i64: 1, 1>}]} {
    %c0_i32 = arith.constant 0 : i32
    %0 = arith.cmpi eq, %arg0, %c0_i32 : i32
    %1 = arith.extui %0 : i1 to i32
    %c0_i32_0 = arith.constant 0 : i32
    %2 = arith.cmpi ne, %1, %c0_i32_0 : i32
    scf.if %2 {
      %cst_29 = arith.constant 0.000000e+00 : f32
      %44 = vector.broadcast %cst_29 : f32 to vector<16x256xf32>
      %c0_30 = arith.constant 0 : index
      %c0_31 = arith.constant 0 : index
      %45 = vector.load %arg11[%c0_30, %c0_31] : memref<16x256xf32, #tpu.memory_space<vmem>>, vector<16x256xf32>
      tpu.vector_store %arg11[%c0_30, %c0_31], %44 {strides = array<i32>} : memref<16x256xf32, #tpu.memory_space<vmem>>, vector<16x256xf32>,
      %cst_32 = arith.constant 0.000000e+00 : f32
      %46 = vector.broadcast %cst_32 : f32 to vector<1x128xf32>
      %c0_33 = arith.constant 0 : index
      %c0_34 = arith.constant 0 : index
      %47 = vector.load %arg12[%c0_33, %c0_34] : memref<1x128xf32, #tpu.memory_space<vmem>>, vector<1x128xf32>
      tpu.vector_store %arg12[%c0_33, %c0_34], %46 {strides = array<i32>} : memref<1x128xf32, #tpu.memory_space<vmem>>, vector<1x128xf32>,
    } else {
    }
    %c0 = arith.constant 0 : index
    %c0_1 = arith.constant 0 : index
    %3 = vector.load %arg1[%c0, %c0_1] : memref<8x256xbf16, #tpu.memory_space<vmem>>, vector<8x256xbf16>
    %c0_2 = arith.constant 0 : index
    %c0_3 = arith.constant 0 : index
    %4 = vector.load %arg3[%c0_2, %c0_3] : memref<256x128xbf16, #tpu.memory_space<vmem>>, vector<256x128xbf16>
    %cst = arith.constant dense<0.000000e+00> : vector<8x128xf32>
    %5 = tpu.matmul %3, %4, %cst {dimension_numbers = #tpu.dot_dimension_numbers<[1], [0], [0], [1], [0, 0, 1, 1], [], []>} : vector<8x256xbf16>, vector<256x128xbf16>, vector<8x128xf32> -> vector<8x128xf32>
    %c0_4 = arith.constant 0 : index
    %c0_5 = arith.constant 0 : index
    %6 = vector.load %arg5[%c0_4, %c0_5] : memref<1x128xf32, #tpu.memory_space<vmem>>, vector<1x128xf32>
    %c0_6 = arith.constant 0 : index
    %c0_7 = arith.constant 0 : index
    %7 = vector.load %arg6[%c0_6, %c0_7] : memref<1x128xf32, #tpu.memory_space<vmem>>, vector<1x128xf32>
    %c0_8 = arith.constant 0 : index
    %c0_9 = arith.constant 0 : index
    %8 = vector.load %arg7[%c0_8, %c0_9] : memref<1x128xf32, #tpu.memory_space<vmem>>, vector<1x128xf32>
    %9 = math.exp %6 : vector<1x128xf32>
    %10 = vector.broadcast %9 : vector<1x128xf32> to vector<8x128xf32>
    %11 = arith.mulf %5, %10 : vector<8x128xf32>
    %12 = vector.broadcast %7 : vector<1x128xf32> to vector<8x128xf32>
    %13 = arith.addf %11, %12 : vector<8x128xf32>
    %cst_10 = arith.constant 0.000000e+00 : f32
    %14 = vector.broadcast %cst_10 : f32 to vector<8x128xf32>
    %15 = arith.maximumf %13, %14 : vector<8x128xf32>
    %16 = vector.broadcast %8 : vector<1x128xf32> to vector<8x128xf32>
    %17 = arith.addf %5, %16 : vector<8x128xf32>
    %cst_11 = arith.constant 0.000000e+00 : f32
    %18 = vector.broadcast %cst_11 : f32 to vector<8x128xf32>
    %19 = arith.maximumf %17, %18 : vector<8x128xf32>
    %cst_12 = arith.constant 0.000000e+00 : f32
    %20 = vector.broadcast %cst_12 : f32 to vector<8x128xf32>
    %21 = arith.cmpf ogt, %17, %20 : vector<8x128xf32>
    %cst_13 = arith.constant 0.000000e+00 : f32
    %22 = vector.broadcast %cst_13 : f32 to vector<8x128xf32>
    %23 = arith.cmpf olt, %17, %22 : vector<8x128xf32>
    %cst_14 = arith.constant 5.000000e-01 : f32
    %24 = vector.broadcast %cst_14 : f32 to vector<8x128xf32>
    %25 = arith.mulf %24, %15 : vector<8x128xf32>
    %cst_15 = arith.constant 0.000000e+00 : f32
    %26 = vector.broadcast %cst_15 : f32 to vector<8x128xf32>
    %27 = arith.select %23, %26, %25 : vector<8x128xi1>, vector<8x128xf32>
    %28 = arith.select %21, %15, %27 : vector<8x128xi1>, vector<8x128xf32>
    %c0_16 = arith.constant 0 : index
    %c0_17 = arith.constant 0 : index
    %29 = vector.load %arg12[%c0_16, %c0_17] : memref<1x128xf32, #tpu.memory_space<vmem>>, vector<1x128xf32>
    %cst_18 = arith.constant dense<0.000000e+00> : vector<128xf32>
    %30 = vector.multi_reduction <add>, %19, %cst_18 [0] : vector<8x128xf32> to vector<128xf32>
    %31 = vector.shape_cast %30 : vector<128xf32> to vector<1x128xf32>
    %32 = arith.addf %29, %31 : vector<1x128xf32>
    %c0_19 = arith.constant 0 : index
    %c0_20 = arith.constant 0 : index
    %33 = vector.load %arg12[%c0_19, %c0_20] : memref<1x128xf32, #tpu.memory_space<vmem>>, vector<1x128xf32>
    tpu.vector_store %arg12[%c0_19, %c0_20], %32 {strides = array<i32>} : memref<1x128xf32, #tpu.memory_space<vmem>>, vector<1x128xf32>,
    %34 = tpu.concatenate %28, %19 in 0 : vector<8x128xf32>, vector<8x128xf32> -> vector<16x128xf32>
    %35 = arith.truncf %34 : vector<16x128xf32> to vector<16x128xbf16>
    %c0_21 = arith.constant 0 : index
    %c0_22 = arith.constant 0 : index
    %36 = vector.load %arg11[%c0_21, %c0_22] : memref<16x256xf32, #tpu.memory_space<vmem>>, vector<16x256xf32>
    %c0_23 = arith.constant 0 : index
    %c0_24 = arith.constant 0 : index
    %37 = vector.load %arg4[%c0_23, %c0_24] : memref<128x256xbf16, #tpu.memory_space<vmem>>, vector<128x256xbf16>
    %cst_25 = arith.constant dense<0.000000e+00> : vector<16x256xf32>
    %38 = tpu.matmul %35, %37, %cst_25 {dimension_numbers = #tpu.dot_dimension_numbers<[1], [0], [0], [1], [0, 0, 1, 1], [], []>} : vector<16x128xbf16>, vector<128x256xbf16>, vector<16x256xf32> -> vector<16x256xf32>
    %39 = arith.addf %36, %38 : vector<16x256xf32>
    %c0_26 = arith.constant 0 : index
    %c0_27 = arith.constant 0 : index
    %40 = vector.load %arg11[%c0_26, %c0_27] : memref<16x256xf32, #tpu.memory_space<vmem>>, vector<16x256xf32>
    tpu.vector_store %arg11[%c0_26, %c0_27], %39 {strides = array<i32>} : memref<16x256xf32, #tpu.memory_space<vmem>>, vector<16x256xf32>,
    %c7_i32 = arith.constant 7 : i32
    %41 = arith.cmpi eq, %arg0, %c7_i32 : i32
    %42 = arith.extui %41 : i1 to i32
    %c0_i32_28 = arith.constant 0 : i32
    %43 = arith.cmpi ne, %42, %c0_i32_28 : i32
    scf.if %43 {
      %c0_29 = arith.constant 0 : index
      %c0_30 = arith.constant 0 : index
      %44 = vector.load %arg8[%c0_29, %c0_30] : memref<1x256xf32, #tpu.memory_space<vmem>>, vector<1x256xf32>
      %c0_31 = arith.constant 0 : index
      %c0_32 = arith.constant 0 : index
      %45 = vector.load %arg2[%c0_31, %c0_32] : memref<8x256xf32, #tpu.memory_space<vmem>>, vector<8x256xf32>
      %c0_33 = arith.constant 0 : index
      %c0_34 = arith.constant 0 : index
      %46 = vector.load %arg11[%c0_33, %c0_34] : memref<16x256xf32, #tpu.memory_space<vmem>>, vector<16x256xf32>
      %47 = vector.extract_strided_slice %46 {offsets = [0, 0], sizes = [8, 256], strides = [1, 1]} : vector<16x256xf32> to vector<8x256xf32>
      %48 = vector.broadcast %44 : vector<1x256xf32> to vector<8x256xf32>
      %49 = arith.addf %47, %48 : vector<8x256xf32>
      %50 = vector.extract_strided_slice %46 {offsets = [8, 0], sizes = [8, 256], strides = [1, 1]} : vector<16x256xf32> to vector<8x256xf32>
      %51 = vector.broadcast %44 : vector<1x256xf32> to vector<8x256xf32>
      %52 = arith.addf %50, %51 : vector<8x256xf32>
      %c0_35 = arith.constant 0 : index
      %c0_36 = arith.constant 0 : index
      %53 = vector.load %arg9[%c0_35, %c0_36] : memref<8x256xf32, #tpu.memory_space<vmem>>, vector<8x256xf32>
      tpu.vector_store %arg9[%c0_35, %c0_36], %49 {strides = array<i32>} : memref<8x256xf32, #tpu.memory_space<vmem>>, vector<8x256xf32>,
      %54 = arith.subf %49, %45 : vector<8x256xf32>
      %55 = arith.mulf %54, %54 : vector<8x256xf32>
      %56 = vector.shape_cast %55 : vector<8x256xf32> to vector<1x8x256xf32>
      %cst_37 = arith.constant dense<0.000000e+00> : vector<1xf32>
      %57 = vector.multi_reduction <add>, %56, %cst_37 [1, 2] : vector<1x8x256xf32> to vector<1xf32>
      %58 = vector.shape_cast %57 : vector<1xf32> to vector<1x1x1xf32>
      %59 = vector.extract %58[0, 0, 0] : f32 from vector<1x1x1xf32>
      %cst_38 = arith.constant 4.8828125E-4 : f32
      %60 = arith.mulf %59, %cst_38 : f32
      %61 = arith.subf %52, %45 : vector<8x256xf32>
      %62 = arith.mulf %61, %61 : vector<8x256xf32>
      %63 = vector.shape_cast %62 : vector<8x256xf32> to vector<1x8x256xf32>
      %cst_39 = arith.constant dense<0.000000e+00> : vector<1xf32>
      %64 = vector.multi_reduction <add>, %63, %cst_39 [1, 2] : vector<1x8x256xf32> to vector<1xf32>
      %65 = vector.shape_cast %64 : vector<1xf32> to vector<1x1x1xf32>
      %66 = vector.extract %65[0, 0, 0] : f32 from vector<1x1x1xf32>
      %cst_40 = arith.constant 4.8828125E-4 : f32
      %67 = arith.mulf %66, %cst_40 : f32
      %c0_41 = arith.constant 0 : index
      %c0_42 = arith.constant 0 : index
      %68 = vector.load %arg12[%c0_41, %c0_42] : memref<1x128xf32, #tpu.memory_space<vmem>>, vector<1x128xf32>
      %69 = vector.shape_cast %68 : vector<1x128xf32> to vector<1x1x128xf32>
      %cst_43 = arith.constant dense<0.000000e+00> : vector<1xf32>
      %70 = vector.multi_reduction <add>, %69, %cst_43 [1, 2] : vector<1x1x128xf32> to vector<1xf32>
      %71 = vector.shape_cast %70 : vector<1xf32> to vector<1x1x1xf32>
      %72 = vector.extract %71[0, 0, 0] : f32 from vector<1x1x1xf32>
      %cst_44 = arith.constant 1.250000e-01 : f32
      %73 = arith.mulf %72, %cst_44 : f32
      %cst_45 = arith.constant 0.00999999977 : f32
      %74 = arith.mulf %cst_45, %73 : f32
      %75 = arith.addf %60, %74 : f32
      %76 = arith.addf %75, %67 : f32
      %77 = vector.broadcast %76 : f32 to vector<1x1xf32>
      %c0_46 = arith.constant 0 : index
      %c0_47 = arith.constant 0 : index
      %78 = vector.load %arg10[%c0_46, %c0_47] : memref<1x1xf32, #tpu.memory_space<vmem>>, vector<1x1xf32>
      tpu.vector_store %arg10[%c0_46, %c0_47], %77 {strides = array<i32>} : memref<1x1xf32, #tpu.memory_space<vmem>>, vector<1x1xf32>,
    } else {
    }
    return
  }
  func.func @transform_0(%arg0: i32) -> (i32, i32) {
    %c0_i32 = arith.constant 0 : i32
    %c0_i32_0 = arith.constant 0 : i32
    %c0_i32_1 = arith.constant 0 : i32
    return %c0_i32, %c0_i32_0 : i32, i32
  }
  func.func @transform_1(%arg0: i32) -> (i32, i32) {
    %c0_i32 = arith.constant 0 : i32
    %c0_i32_0 = arith.constant 0 : i32
    %c0_i32_1 = arith.constant 0 : i32
    return %c0_i32, %c0_i32_0 : i32, i32
  }
  func.func @transform_2(%arg0: i32) -> (i32, i32) {
    %c0_i32 = arith.constant 0 : i32
    %c0_i32_0 = arith.constant 0 : i32
    return %c0_i32, %arg0 : i32, i32
  }
  func.func @transform_3(%arg0: i32) -> (i32, i32) {
    %c0_i32 = arith.constant 0 : i32
    %c0_i32_0 = arith.constant 0 : i32
    return %arg0, %c0_i32 : i32, i32
  }
  func.func @transform_4(%arg0: i32) -> (i32, i32) {
    %c0_i32 = arith.constant 0 : i32
    %c0_i32_0 = arith.constant 0 : i32
    return %c0_i32, %arg0 : i32, i32
  }
  func.func @transform_5(%arg0: i32) -> (i32, i32) {
    %c0_i32 = arith.constant 0 : i32
    %c0_i32_0 = arith.constant 0 : i32
    return %c0_i32, %arg0 : i32, i32
  }
  func.func @transform_6(%arg0: i32) -> (i32, i32) {
    %c0_i32 = arith.constant 0 : i32
    %c0_i32_0 = arith.constant 0 : i32
    return %c0_i32, %arg0 : i32, i32
  }
  func.func @transform_7(%arg0: i32) -> (i32, i32) {
    %c0_i32 = arith.constant 0 : i32
    %c0_i32_0 = arith.constant 0 : i32
    %c0_i32_1 = arith.constant 0 : i32
    return %c0_i32, %c0_i32_0 : i32, i32
  }
  func.func @transform_8(%arg0: i32) -> (i32, i32) {
    %c0_i32 = arith.constant 0 : i32
    %c0_i32_0 = arith.constant 0 : i32
    %c0_i32_1 = arith.constant 0 : i32
    return %c0_i32, %c0_i32_0 : i32, i32
  }
  func.func @transform_9(%arg0: i32) -> (i32, i32) {
    %c0_i32 = arith.constant 0 : i32
    %c0_i32_0 = arith.constant 0 : i32
    %c0_i32_1 = arith.constant 0 : i32
    return %c0_i32, %c0_i32_0 : i32, i32
  }
}

</mosaic_0001>

<llo_original>
// kernel: tpu_custom_call.1
$region0: #{tpu_custom_call.1}
  #allocation0 [shape = 'u32[]', space=smem, size = 0x4, offset = 0x4, fixed_abs, tag = 'smem constant byte address 0x4 - core index']
  #allocation1 [shape = 'u32[144,128]{1,0:T(1,128)}', space=vmem, size = 0x12000, scoped, tag = 'internal scratch']
  #allocation2 [shape = 'f32[16,256]{1,0:T(8,128)}', space=vmem, size = 0x4000, scoped, tag = 'scratch operand']
  #allocation3 [shape = 'f32[1,128]{1,0:T(1,128)}', space=vmem, size = 0x200, scoped, tag = 'scratch operand']
  %s0 = inlined_call_operand.hbm [shape: bf16[8,256], index: 0, kind: input, shape index: {}]
  %s1 = inlined_call_operand.hbm [shape: f32[8,256], index: 1, kind: input, shape index: {}]
  %s2 = inlined_call_operand.hbm [shape: bf16[256,1024], index: 2, kind: input, shape index: {}]
  %s3 = inlined_call_operand.hbm [shape: bf16[1024,256], index: 3, kind: input, shape index: {}]
  %s4 = inlined_call_operand.vmem [shape: f32[1,1024], index: 4, kind: input, shape index: {}]
  %s5 = inlined_call_operand.vmem [shape: f32[1,1024], index: 5, kind: input, shape index: {}]
  %s6 = inlined_call_operand.hbm [shape: f32[1,1024], index: 6, kind: input, shape index: {}]
  %s7 = inlined_call_operand.vmem [shape: f32[1,256], index: 7, kind: input, shape index: {}]
  %s8 = inlined_call_operand.hbm [shape: f32[8,256], index: 8, kind: output, shape index: {0}]
  %s9 = inlined_call_operand.hbm [shape: f32[1,1], index: 9, kind: output, shape index: {1}]
  %10 = xla_tuple %s8, %s9
  %s11 = sld [smem:[#allocation0]]
  $region101: #{tpu_custom_call.1} parent=0
    _
  %s13 = ssub.s32 1, %s11
  %s14 = scalar_select 0, %s13, %s11
  $region1: #{tpu_custom_call.1} parent=0
    #allocation4 [shape = 'u8[4096]{0}', space=vmem, size = 0x1000, scoped, tag = 'input window, operand 0, single buffered']
    #allocation5 [shape = 's32[2]{0}', space=sflag, size = 0x8, scoped, tag = 'scoped memory for tpu_custom_call.1']
    #allocation6 [shape = 's32[2]{0}', space=sflag, size = 0x8, scoped, tag = 'scoped memory for tpu_custom_call.1']
    #allocation7 [shape = 'u8[8192]{0}', space=vmem, size = 0x2000, scoped, tag = 'input window, operand 1, single buffered']
    #allocation8 [shape = 's32[1]{0}', space=sflag, size = 0x4, scoped, tag = 'scoped memory for tpu_custom_call.1']
    #allocation9 [shape = 'u8[131072]{0}', space=vmem, size = 0x20000, scoped, tag = 'input window, operand 2']
    #allocation10 [shape = 'u8[131072]{0}', space=vmem, size = 0x20000, scoped, tag = 'input window, operand 3']
    #allocation11 [shape = 'u8[1024]{0}', space=vmem, size = 0x400, scoped, tag = 'input window, operand 6']
    #allocation12 [shape = 'u8[8192]{0}', space=vmem, size = 0x2000, scoped, tag = 'output window, operand 0, single buffered']
    #allocation13 [shape = 'u8[512]{0}', space=vmem, size = 0x400, scoped, tag = 'output window, operand 1, single buffered']
    #allocation14 [shape = 's32[1]{0}', space=sflag, size = 0x4, scoped, tag = 'scoped memory for tpu_custom_call.1']
    %15 = vsyncpa [#allocation5], 0
    %16 = vsyncpa [#allocation8], 0
    %17 = vsyncpa [#allocation6], 0
    %18 = vsyncpa [#allocation14], 0
    loop: start=0, step=1, limit=10
    $region2: #{tpu_custom_call.1} parent=1 // loop_pre_header
      _
    $region3: #{tpu_custom_call.1} parent=1 // loop_header
      %s20 = sphi 0, %s24
      %p21 = scmp.ge.s32.totalorder %s20, 10
      %s28 = sphi 0, %s28
      %s30 = sphi 0, %s28
      %s31 = sphi 0, %s30
      %s45 = sphi 0, %s31
      %s49 = sphi 0, %s49
      %s51 = sphi 0, %s49
      %s52 = sphi 0, %s51
      %s66 = sphi 0, %s52
      %s72 = sphi 0, %s74
      %s75 = sphi 0, %s72
      %s76 = sphi 0, %s75
      %s92 = sphi 0, %s76
      %s98 = sphi 0, %s100
      %s101 = sphi 0, %s98
      %s102 = sphi 0, %s101
      %s118 = sphi 0, %s102
      %s124 = sphi 0, %s126
      %s127 = sphi 0, %s124
      %s128 = sphi 0, %s127
      %s144 = sphi 0, %s128
      %s150 = sphi 0, %s152
      %s153 = sphi 0, %s150
      %s154 = sphi 0, %s153
      %s170 = sphi 0, %s154
      %s176 = sphi 0, %s178
      %s179 = sphi 0, %s176
      %s180 = sphi 0, %s179
      %s196 = sphi 0, %s180
      %s200 = sphi 0, %s200
      %s202 = sphi 0, %s200
      %s203 = sphi 0, %s202
      %s217 = sphi 0, %s203
      %s221 = sphi 0, %s221
      %s223 = sphi 0, %s221
      %s224 = sphi 0, %s223
      %s238 = sphi 0, %s224
      %s242 = sphi 0, %s242
      %s244 = sphi 0, %s242
      %s245 = sphi 0, %s244
      %s259 = sphi 0, %s245
    $region4: #{tpu_custom_call.1} parent=1 // loop_header_branch
      %23 = sbr.rel (%p21) target = $region8
    $region5: #{tpu_custom_call.1} parent=1 // loop_body
      %s25 = ssub.s32 %s20, 1
      %s26 = ssub.s32 %s20, 2
      %s27 = sadd.s32 %s20, 1
      %s29 = sadd.s32 %s28, 1
      %p32 = scmp.eq.s32.totalorder %s20, 7
      %p33 = scmp.ne.s32.totalorder %s28, %s30
      %p34 = scmp.eq.s32.totalorder %s20, 0
      %p35 = por %p33, %p34
      %p36 = scmp.ne.s32.totalorder %s28, %s30
      %p37 = scmp.eq.s32.totalorder %s25, 7
      %p38 = por %p36, %p37
      %p39 = scmp.ne.s32.totalorder %s30, %s31
      %p40 = scmp.eq.s32.totalorder %s25, 0
      %p41 = por %p39, %p40
      %p42 = scmp.ne.s32.totalorder %s30, %s31
      %p43 = scmp.eq.s32.totalorder %s26, 7
      %p44 = por %p42, %p43
      %p46 = scmp.ne.s32.totalorder %s31, %s45
      %p47 = scmp.eq.s32.totalorder %s26, 0
      %p48 = por %p46, %p47
      %s50 = sadd.s32 %s49, 1
      %p53 = scmp.eq.s32.totalorder %s20, 7
      %p54 = scmp.ne.s32.totalorder %s49, %s51
      %p55 = scmp.eq.s32.totalorder %s20, 0
      %p56 = por %p54, %p55
      %p57 = scmp.ne.s32.totalorder %s49, %s51
      %p58 = scmp.eq.s32.totalorder %s25, 7
      %p59 = por %p57, %p58
      %p60 = scmp.ne.s32.totalorder %s51, %s52
      %p61 = scmp.eq.s32.totalorder %s25, 0
      %p62 = por %p60, %p61
      %p63 = scmp.ne.s32.totalorder %s51, %s52
      %p64 = scmp.eq.s32.totalorder %s26, 7
      %p65 = por %p63, %p64
      %p67 = scmp.ne.s32.totalorder %s52, %s66
      %p68 = scmp.eq.s32.totalorder %s26, 0
      %p69 = por %p67, %p68
      %s70 = ssub.s32 %s20, %s27
      %p71 = scmp.eq.s32.totalorder %s70, 0
      %s73 = sadd.s32 %s72, 1
      %s74 = scalar_select %p71, %s72, %s73
      %p77 = pneg %p71
      %p78 = scmp.eq.s32.totalorder %s20, 7
      %p79 = por %p77, %p78
      %p80 = scmp.ne.s32.totalorder %s72, %s75
      %p81 = scmp.eq.s32.totalorder %s20, 0
      %p82 = por %p80, %p81
      %p83 = scmp.ne.s32.totalorder %s72, %s75
      %p84 = scmp.eq.s32.totalorder %s25, 7
      %p85 = por %p83, %p84
      %p86 = scmp.ne.s32.totalorder %s75, %s76
      %p87 = scmp.eq.s32.totalorder %s25, 0
      %p88 = por %p86, %p87
      %p89 = scmp.ne.s32.totalorder %s75, %s76
      %p90 = scmp.eq.s32.totalorder %s26, 7
      %p91 = por %p89, %p90
      %p93 = scmp.ne.s32.totalorder %s76, %s92
      %p94 = scmp.eq.s32.totalorder %s26, 0
      %p95 = por %p93, %p94
      %s96 = ssub.s32 %s20, %s27
      %p97 = scmp.eq.s32.totalorder %s96, 0
      %s99 = sadd.s32 %s98, 1
      %s100 = scalar_select %p97, %s98, %s99
      %p103 = pneg %p97
      %p104 = scmp.eq.s32.totalorder %s20, 7
      %p105 = por %p103, %p104
      %p106 = scmp.ne.s32.totalorder %s98, %s101
      %p107 = scmp.eq.s32.totalorder %s20, 0
      %p108 = por %p106, %p107
      %p109 = scmp.ne.s32.totalorder %s98, %s101
      %p110 = scmp.eq.s32.totalorder %s25, 7
      %p111 = por %p109, %p110
      %p112 = scmp.ne.s32.totalorder %s101, %s102
      %p113 = scmp.eq.s32.totalorder %s25, 0
      %p114 = por %p112, %p113
      %p115 = scmp.ne.s32.totalorder %s101, %s102
      %p116 = scmp.eq.s32.totalorder %s26, 7
      %p117 = por %p115, %p116
      %p119 = scmp.ne.s32.totalorder %s102, %s118
      %p120 = scmp.eq.s32.totalorder %s26, 0
      %p121 = por %p119, %p120
      %s122 = ssub.s32 %s20, %s27
      %p123 = scmp.eq.s32.totalorder %s122, 0
      %s125 = sadd.s32 %s124, 1
      %s126 = scalar_select %p123, %s124, %s125
      %p129 = pneg %p123
      %p130 = scmp.eq.s32.totalorder %s20, 7
      %p131 = por %p129, %p130
      %p132 = scmp.ne.s32.totalorder %s124, %s127
      %p133 = scmp.eq.s32.totalorder %s20, 0
      %p134 = por %p132, %p133
      %p135 = scmp.ne.s32.totalorder %s124, %s127
      %p136 = scmp.eq.s32.totalorder %s25, 7
      %p137 = por %p135, %p136
      %p138 = scmp.ne.s32.totalorder %s127, %s128
      %p139 = scmp.eq.s32.totalorder %s25, 0
      %p140 = por %p138, %p139
      %p141 = scmp.ne.s32.totalorder %s127, %s128
      %p142 = scmp.eq.s32.totalorder %s26, 7
      %p143 = por %p141, %p142
      %p145 = scmp.ne.s32.totalorder %s128, %s144
      %p146 = scmp.eq.s32.totalorder %s26, 0
      %p147 = por %p145, %p146
      %s148 = ssub.s32 %s20, %s27
      %p149 = scmp.eq.s32.totalorder %s148, 0
      %s151 = sadd.s32 %s150, 1
      %s152 = scalar_select %p149, %s150, %s151
      %p155 = pneg %p149
      %p156 = scmp.eq.s32.totalorder %s20, 7
      %p157 = por %p155, %p156
      %p158 = scmp.ne.s32.totalorder %s150, %s153
      %p159 = scmp.eq.s32.totalorder %s20, 0
      %p160 = por %p158, %p159
      %p161 = scmp.ne.s32.totalorder %s150, %s153
      %p162 = scmp.eq.s32.totalorder %s25, 7
      %p163 = por %p161, %p162
      %p164 = scmp.ne.s32.totalorder %s153, %s154
      %p165 = scmp.eq.s32.totalorder %s25, 0
      %p166 = por %p164, %p165
      %p167 = scmp.ne.s32.totalorder %s153, %s154
      %p168 = scmp.eq.s32.totalorder %s26, 7
      %p169 = por %p167, %p168
      %p171 = scmp.ne.s32.totalorder %s154, %s170
      %p172 = scmp.eq.s32.totalorder %s26, 0
      %p173 = por %p171, %p172
      %s174 = ssub.s32 %s20, %s27
      %p175 = scmp.eq.s32.totalorder %s174, 0
      %s177 = sadd.s32 %s176, 1
      %s178 = scalar_select %p175, %s176, %s177
      %p181 = pneg %p175
      %p182 = scmp.eq.s32.totalorder %s20, 7
      %p183 = por %p181, %p182
      %p184 = scmp.ne.s32.totalorder %s176, %s179
      %p185 = scmp.eq.s32.totalorder %s20, 0
      %p186 = por %p184, %p185
      %p187 = scmp.ne.s32.totalorder %s176, %s179
      %p188 = scmp.eq.s32.totalorder %s25, 7
      %p189 = por %p187, %p188
      %p190 = scmp.ne.s32.totalorder %s179, %s180
      %p191 = scmp.eq.s32.totalorder %s25, 0
      %p192 = por %p190, %p191
      %p193 = scmp.ne.s32.totalorder %s179, %s180
      %p194 = scmp.eq.s32.totalorder %s26, 7
      %p195 = por %p193, %p194
      %p197 = scmp.ne.s32.totalorder %s180, %s196
      %p198 = scmp.eq.s32.totalorder %s26, 0
      %p199 = por %p197, %p198
      %s201 = sadd.s32 %s200, 1
      %p204 = scmp.eq.s32.totalorder %s20, 7
      %p205 = scmp.ne.s32.totalorder %s200, %s202
      %p206 = scmp.eq.s32.totalorder %s20, 0
      %p207 = por %p205, %p206
      %p208 = scmp.ne.s32.totalorder %s200, %s202
      %p209 = scmp.eq.s32.totalorder %s25, 7
      %p210 = por %p208, %p209
      %p211 = scmp.ne.s32.totalorder %s202, %s203
      %p212 = scmp.eq.s32.totalorder %s25, 0
      %p213 = por %p211, %p212
      %p214 = scmp.ne.s32.totalorder %s202, %s203
      %p215 = scmp.eq.s32.totalorder %s26, 7
      %p216 = por %p214, %p215
      %p218 = scmp.ne.s32.totalorder %s203, %s217
      %p219 = scmp.eq.s32.totalorder %s26, 0
      %p220 = por %p218, %p219
      %s222 = sadd.s32 %s221, 1
      %p225 = scmp.eq.s32.totalorder %s20, 7
      %p226 = scmp.ne.s32.totalorder %s221, %s223
      %p227 = scmp.eq.s32.totalorder %s20, 0
      %p228 = por %p226, %p227
      %p229 = scmp.ne.s32.totalorder %s221, %s223
      %p230 = scmp.eq.s32.totalorder %s25, 7
      %p231 = por %p229, %p230
      %p232 = scmp.ne.s32.totalorder %s223, %s224
      %p233 = scmp.eq.s32.totalorder %s25, 0
      %p234 = por %p232, %p233
      %p235 = scmp.ne.s32.totalorder %s223, %s224
      %p236 = scmp.eq.s32.totalorder %s26, 7
      %p237 = por %p235, %p236
      %p239 = scmp.ne.s32.totalorder %s224, %s238
      %p240 = scmp.eq.s32.totalorder %s26, 0
      %p241 = por %p239, %p240
      %s243 = sadd.s32 %s242, 1
      %p246 = scmp.eq.s32.totalorder %s20, 7
      %p247 = scmp.ne.s32.totalorder %s242, %s244
      %p248 = scmp.eq.s32.totalorder %s20, 0
      %p249 = por %p247, %p248
      %p250 = scmp.ne.s32.totalorder %s242, %s244
      %p251 = scmp.eq.s32.totalorder %s25, 7
      %p252 = por %p250, %p251
      %p253 = scmp.ne.s32.totalorder %s244, %s245
      %p254 = scmp.eq.s32.totalorder %s25, 0
      %p255 = por %p253, %p254
      %p256 = scmp.ne.s32.totalorder %s244, %s245
      %p257 = scmp.eq.s32.totalorder %s26, 7
      %p258 = por %p256, %p257
      %p260 = scmp.ne.s32.totalorder %s245, %s259
      %p261 = scmp.eq.s32.totalorder %s26, 0
      %p262 = por %p260, %p261
      %p263 = scmp.le.s32.totalorder 1, %s20
      %p264 = scmp.lt.s32.totalorder %s20, 9
      %p265 = pnand %p263, %p264
      %p266 = pneg %p265
      // Predicated region
      $region9: #{tpu_custom_call.1} parent=5 // pred_check
        _
      $region10: #{tpu_custom_call.1} parent=5 // pred_check_branch
        %268 = sbr.rel (%p265) target = $region12
      $region11: #{tpu_custom_call.1} parent=5 // pred_region
        %s269 = ssub.s32 %s20, 1
        // Predicated region
        $region13: #{tpu_custom_call.1} parent=11 // pred_check
          %p270 = pneg %p41
        $region14: #{tpu_custom_call.1} parent=11 // pred_check_branch
          %272 = sbr.rel (%p270) target = $region16
        $region15: #{tpu_custom_call.1} parent=11 // pred_region
          %s274 = ssub.s32 128, 128
          %275 = vsyncadd [#allocation5], %s274
          %s277 = sshll.u32 [#allocation4], 4
          %s278 = int_to_ptr.vmem [resolvable:$true] %s277
          %280 = dma.hbm_to_vmem [thread:$0]  %s0, 128, %s278, [#allocation5]
        $region16: #{tpu_custom_call.1} parent=11 // pred_fallthru
          _
        // Predicated region
        $region17: #{tpu_custom_call.1} parent=11 // pred_check
          %p281 = pneg %p62
        $region18: #{tpu_custom_call.1} parent=11 // pred_check_branch
          %283 = sbr.rel (%p281) target = $region20
        $region19: #{tpu_custom_call.1} parent=11 // pred_region
          %s285 = ssub.s32 256, 256
          %286 = vsyncadd [#allocation8], %s285
          %s288 = sshll.u32 [#allocation7], 4
          %s289 = int_to_ptr.vmem [resolvable:$true] %s288
          %291 = dma.hbm_to_vmem [thread:$0]  %s1, 256, %s289, [#allocation8]
        $region20: #{tpu_custom_call.1} parent=11 // pred_fallthru
          _
        // Predicated region
        $region21: #{tpu_custom_call.1} parent=11 // pred_check
          %p292 = pneg %p213
        $region22: #{tpu_custom_call.1} parent=11 // pred_check_branch
          %294 = sbr.rel (%p292) target = $region24
        $region23: #{tpu_custom_call.1} parent=11 // pred_region
          _
        $region24: #{tpu_custom_call.1} parent=11 // pred_fallthru
          _
      $region12: #{tpu_custom_call.1} parent=5 // pred_fallthru
        _
      %p295 = scmp.lt.s32.totalorder %s20, 8
      // Predicated region
      $region25: #{tpu_custom_call.1} parent=5 // pred_check
        %p296 = pneg %p295
      $region26: #{tpu_custom_call.1} parent=5 // pred_check_branch
        %298 = sbr.rel (%p296) target = $region28
      $region27: #{tpu_custom_call.1} parent=5 // pred_region
        // Predicated region
        $region29: #{tpu_custom_call.1} parent=27 // pred_check
          %p299 = pneg %p82
        $region30: #{tpu_custom_call.1} parent=27 // pred_check_branch
          %301 = sbr.rel (%p299) target = $region32
        $region31: #{tpu_custom_call.1} parent=27 // pred_region
          %s302 = sand.u32 %s20, 1
          %s303 = scalar_lea.sflag [#allocation5], %s302
          %s304 = sand.u32 %s72, 1
          %s305 = smul.addr %s304, 128
          %s306 = scalar_lea.vmem [#allocation9], %s305
          %s308 = ssub.s32 2048, 2048
          %309 = vsyncadd %s303, %s308
          %s310 = smul.addr %s20, 64
          %s311 = scalar_lea.hbm %s2, %s310
          %s312 = sshll.u32 %s306, 4
          %s313 = int_to_ptr.vmem [resolvable:$true] %s312
          %318 = dma.hbm_to_vmem [thread:$0]  %s311, 2048, %s313, %s303, 512, 64, 4
        $region32: #{tpu_custom_call.1} parent=27 // pred_fallthru
          _
        // Predicated region
        $region33: #{tpu_custom_call.1} parent=27 // pred_check
          %p319 = pneg %p108
        $region34: #{tpu_custom_call.1} parent=27 // pred_check_branch
          %321 = sbr.rel (%p319) target = $region36
        $region35: #{tpu_custom_call.1} parent=27 // pred_region
          %s322 = sand.u32 %s20, 1
          %s323 = scalar_lea.sflag [#allocation5], %s322
          %s324 = sand.u32 %s98, 1
          %s325 = smul.addr %s324, 128
          %s326 = scalar_lea.vmem [#allocation10], %s325
          %s327 = smul.u32 16, %s20
          %s329 = ssub.s32 2048, 2048
          %330 = vsyncadd %s323, %s329
          %s331 = smul.addr %s327, 2
          %s332 = smul.addr %s331, 64
          %s333 = scalar_lea.hbm %s3, %s332
          %s334 = sshll.u32 %s326, 4
          %s335 = int_to_ptr.vmem [resolvable:$true] %s334
          %340 = dma.hbm_to_vmem [thread:$0]  %s333, 2048, %s335, %s323, 128, 128, 8
        $region36: #{tpu_custom_call.1} parent=27 // pred_fallthru
          _
        // Predicated region
        $region37: #{tpu_custom_call.1} parent=27 // pred_check
          %p341 = pneg %p134
        $region38: #{tpu_custom_call.1} parent=27 // pred_check_branch
          %343 = sbr.rel (%p341) target = $region40
        $region39: #{tpu_custom_call.1} parent=27 // pred_region
          %p344 = scmp.lt.s32.totalorder %s20, 7
          %s345 = scalar_select %p344, %s20, 7
          %s346 = scalar_lea.vmem %s4, %s345
        $region40: #{tpu_custom_call.1} parent=27 // pred_fallthru
          _
        // Predicated region
        $region41: #{tpu_custom_call.1} parent=27 // pred_check
          %p347 = pneg %p160
        $region42: #{tpu_custom_call.1} parent=27 // pred_check_branch
          %349 = sbr.rel (%p347) target = $region44
        $region43: #{tpu_custom_call.1} parent=27 // pred_region
          %p350 = scmp.lt.s32.totalorder %s20, 7
          %s351 = scalar_select %p350, %s20, 7
          %s352 = scalar_lea.vmem %s5, %s351
        $region44: #{tpu_custom_call.1} parent=27 // pred_fallthru
          _
        // Predicated region
        $region45: #{tpu_custom_call.1} parent=27 // pred_check
          %p353 = pneg %p186
        $region46: #{tpu_custom_call.1} parent=27 // pred_check_branch
          %355 = sbr.rel (%p353) target = $region48
        $region47: #{tpu_custom_call.1} parent=27 // pred_region
          %s356 = sand.u32 %s20, 1
          %s357 = scalar_lea.sflag [#allocation5], %s356
          %s358 = sand.u32 %s176, 1
          %s359 = scalar_lea.vmem [#allocation11], %s358
          %s361 = ssub.s32 16, 16
          %362 = vsyncadd %s357, %s361
          %s363 = smul.addr %s20, 16
          %s364 = scalar_lea.hbm %s6, %s363
          %s366 = sshll.u32 %s359, 4
          %s367 = int_to_ptr.vmem [resolvable:$true] %s366
          %369 = dma.hbm_to_vmem [thread:$0]  %s364, 16, %s367, %s357
        $region48: #{tpu_custom_call.1} parent=27 // pred_fallthru
          _
      $region28: #{tpu_custom_call.1} parent=5 // pred_fallthru
        _
      %p370 = scmp.le.s32.totalorder 1, %s20
      %p371 = scmp.lt.s32.totalorder %s20, 9
      %p372 = pnand %p370, %p371
      %p373 = pneg %p372
      // Predicated region
      $region49: #{tpu_custom_call.1} parent=5 // pred_check
        _
      $region50: #{tpu_custom_call.1} parent=5 // pred_check_branch
        %375 = sbr.rel (%p372) target = $region52
      $region51: #{tpu_custom_call.1} parent=5 // pred_region
        %s376 = ssub.s32 %s20, 1
        // Predicated region
        $region53: #{tpu_custom_call.1} parent=51 // pred_check
          %p377 = pneg %p41
        $region54: #{tpu_custom_call.1} parent=51 // pred_check_branch
          %379 = sbr.rel (%p377) target = $region56
        $region55: #{tpu_custom_call.1} parent=51 // pred_region
          %380 = dma.done [#allocation5], 128
        $region56: #{tpu_custom_call.1} parent=51 // pred_fallthru
          _
        // Predicated region
        $region57: #{tpu_custom_call.1} parent=51 // pred_check
          %p381 = pneg %p62
        $region58: #{tpu_custom_call.1} parent=51 // pred_check_branch
          %383 = sbr.rel (%p381) target = $region60
        $region59: #{tpu_custom_call.1} parent=51 // pred_region
          %384 = dma.done [#allocation8], 256
        $region60: #{tpu_custom_call.1} parent=51 // pred_fallthru
          _
        %s385 = sand.u32 %s25, 1
        %s386 = scalar_lea.sflag [#allocation5], %s385
        %s387 = sand.u32 %s75, 1
        %s388 = smul.addr %s387, 128
        %s389 = scalar_lea.vmem [#allocation9], %s388
        // Predicated region
        $region61: #{tpu_custom_call.1} parent=51 // pred_check
          %p390 = pneg %p88
        $region62: #{tpu_custom_call.1} parent=51 // pred_check_branch
          %392 = sbr.rel (%p390) target = $region64
        $region63: #{tpu_custom_call.1} parent=51 // pred_region
          %393 = dma.done %s386, 2048
        $region64: #{tpu_custom_call.1} parent=51 // pred_fallthru
          _
        %s394 = sand.u32 %s25, 1
        %s395 = scalar_lea.sflag [#allocation5], %s394
        %s396 = sand.u32 %s101, 1
        %s397 = smul.addr %s396, 128
        %s398 = scalar_lea.vmem [#allocation10], %s397
        // Predicated region
        $region65: #{tpu_custom_call.1} parent=51 // pred_check
          %p399 = pneg %p114
        $region66: #{tpu_custom_call.1} parent=51 // pred_check_branch
          %401 = sbr.rel (%p399) target = $region68
        $region67: #{tpu_custom_call.1} parent=51 // pred_region
          %402 = dma.done %s395, 2048
        $region68: #{tpu_custom_call.1} parent=51 // pred_fallthru
          _
        %s403 = sand.u32 %s25, 1
        %s404 = scalar_lea.sflag [#allocation5], %s403
        %s405 = sand.u32 %s179, 1
        %s406 = scalar_lea.vmem [#allocation11], %s405
        // Predicated region
        $region69: #{tpu_custom_call.1} parent=51 // pred_check
          %p407 = pneg %p192
        $region70: #{tpu_custom_call.1} parent=51 // pred_check_branch
          %409 = sbr.rel (%p407) target = $region72
        $region71: #{tpu_custom_call.1} parent=51 // pred_region
          %410 = dma.done %s404, 16
        $region72: #{tpu_custom_call.1} parent=51 // pred_fallthru
          _
        %p411 = pneg %p41
        %p412 = pneg %p38
        %p413 = pneg %p62
        %p414 = pneg %p59
        %s415 = sand.u32 %s25, 1
        %s416 = scalar_lea.sflag [#allocation5], %s415
        %s417 = sand.u32 %s75, 1
        %s418 = smul.addr %s417, 128
        %s419 = scalar_lea.vmem [#allocation9], %s418
        %p420 = pneg %p88
        %p421 = pneg %p85
        %s422 = sand.u32 %s25, 1
        %s423 = scalar_lea.sflag [#allocation5], %s422
        %s424 = sand.u32 %s101, 1
        %s425 = smul.addr %s424, 128
        %s426 = scalar_lea.vmem [#allocation10], %s425
        %p427 = pneg %p114
        %p428 = pneg %p111
        %p429 = scmp.lt.s32.totalorder %s25, 7
        %s430 = scalar_select %p429, %s25, 7
        %s431 = scalar_lea.vmem %s4, %s430
        %p432 = pneg %p140
        %p433 = pneg %p137
        %p434 = scmp.lt.s32.totalorder %s25, 7
        %s435 = scalar_select %p434, %s25, 7
        %s436 = scalar_lea.vmem %s5, %s435
        %p437 = pneg %p166
        %p438 = pneg %p163
        %s439 = sand.u32 %s25, 1
        %s440 = scalar_lea.sflag [#allocation5], %s439
        %s441 = sand.u32 %s179, 1
        %s442 = scalar_lea.vmem [#allocation11], %s441
        %p443 = pneg %p192
        %p444 = pneg %p189
        %p445 = pneg %p213
        %p446 = pneg %p210
        %p447 = pneg %p234
        %p448 = pneg %p231
        %p449 = pneg %p255
        %p450 = pneg %p252
        %s451 = smul.u32 16, %s25
        %p452 = scmp.lt.s32.totalorder %s25, 7
        %s453 = scalar_select %p452, %s25, 7
        %s454 = scalar_lea.vmem %s4, %s453
        %p455 = scmp.lt.s32.totalorder %s25, 7
        %s456 = scalar_select %p455, %s25, 7
        %s457 = scalar_lea.vmem %s5, %s456
        %p459 = scmp.eq.s32.totalorder %s25, 0
        // Predicated region
        $region73: #{tpu_custom_call.1} parent=51 // pred_check
          %p460 = pneg %p459
        $region74: #{tpu_custom_call.1} parent=51 // pred_check_branch
          %462 = sbr.rel (%p460) target = $region76
        $region75: #{tpu_custom_call.1} parent=51 // pred_region
          %463 = vst [vmem:[#allocation2] sm:$0xff] 0.0
          %464 = vst [vmem:[#allocation2 + $0x8] sm:$0xff] 0.0
          %465 = vst [vmem:[#allocation2 + $0x10] sm:$0xff] 0.0
          %466 = vst [vmem:[#allocation2 + $0x18] sm:$0xff] 0.0
          %467 = vst [vmem:[#allocation3] sm:$0x1] 0.0
        $region76: #{tpu_custom_call.1} parent=51 // pred_fallthru
          _
        %v468 = vld [vmem:[#allocation4] sm:$0xff]
        %v469 = vld [vmem:[%s389] sm:$0xf]
        %v470 = vld [vmem:[%s389 + $0x4] sm:$0xf]
        %v471 = vld [vmem:[%s389 + $0x8] sm:$0xf]
        %v472 = vld [vmem:[%s389 + $0xc] sm:$0xf]
        %v473 = vld [vmem:[%s389 + $0x10] sm:$0xf]
        %v474 = vld [vmem:[%s389 + $0x14] sm:$0xf]
        %v475 = vld [vmem:[%s389 + $0x18] sm:$0xf]
        %v476 = vld [vmem:[%s389 + $0x1c] sm:$0xf]
        %v477 = vld [vmem:[%s389 + $0x20] sm:$0xf]
        %v478 = vld [vmem:[%s389 + $0x24] sm:$0xf]
        %v479 = vld [vmem:[%s389 + $0x28] sm:$0xf]
        %v480 = vld [vmem:[%s389 + $0x2c] sm:$0xf]
        %v481 = vld [vmem:[%s389 + $0x30] sm:$0xf]
        %v482 = vld [vmem:[%s389 + $0x34] sm:$0xf]
        %v483 = vld [vmem:[%s389 + $0x38] sm:$0xf]
        %v484 = vld [vmem:[%s389 + $0x3c] sm:$0xf]
        %v485 = vld [vmem:[%s389 + $0x40] sm:$0xf]
        %v486 = vld [vmem:[%s389 + $0x44] sm:$0xf]
        %v487 = vld [vmem:[%s389 + $0x48] sm:$0xf]
        %v488 = vld [vmem:[%s389 + $0x4c] sm:$0xf]
        %v489 = vld [vmem:[%s389 + $0x50] sm:$0xf]
        %v490 = vld [vmem:[%s389 + $0x54] sm:$0xf]
        %v491 = vld [vmem:[%s389 + $0x58] sm:$0xf]
        %v492 = vld [vmem:[%s389 + $0x5c] sm:$0xf]
        %v493 = vld [vmem:[%s389 + $0x60] sm:$0xf]
        %v494 = vld [vmem:[%s389 + $0x64] sm:$0xf]
        %v495 = vld [vmem:[%s389 + $0x68] sm:$0xf]
        %v496 = vld [vmem:[%s389 + $0x6c] sm:$0xf]
        %v497 = vld [vmem:[%s389 + $0x70] sm:$0xf]
        %v498 = vld [vmem:[%s389 + $0x74] sm:$0xf]
        %v499 = vld [vmem:[%s389 + $0x78] sm:$0xf]
        %v500 = vld [vmem:[%s389 + $0x7c] sm:$0xf]
        %v502 = vunpack.c.l.b16 %v468
        %v503 = vunpack.c.h.b16 %v468
        %v504 = vpack.c.b16 %v502, %v502
        %v505 = vpack.c.b16 %v503, %v503
        %v540 = vunpack.c.l.b16 %v469
        %v541 = vunpack.c.l.b16 %v470
        %v542 = vunpack.c.l.b16 %v471
        %v543 = vunpack.c.l.b16 %v472
        %v544 = vunpack.c.l.b16 %v473
        %v545 = vunpack.c.l.b16 %v474
        %v546 = vunpack.c.l.b16 %v475
        %v547 = vunpack.c.l.b16 %v476
        %v548 = vunpack.c.l.b16 %v477
        %v549 = vunpack.c.l.b16 %v478
        %v550 = vunpack.c.l.b16 %v479
        %v551 = vunpack.c.l.b16 %v480
        %v552 = vunpack.c.l.b16 %v481
        %v553 = vunpack.c.l.b16 %v482
        %v554 = vunpack.c.l.b16 %v483
        %v555 = vunpack.c.l.b16 %v484
        %v556 = vunpack.c.l.b16 %v485
        %v557 = vunpack.c.l.b16 %v486
        %v558 = vunpack.c.l.b16 %v487
        %v559 = vunpack.c.l.b16 %v488
        %v560 = vunpack.c.l.b16 %v489
        %v561 = vunpack.c.l.b16 %v490
        %v562 = vunpack.c.l.b16 %v491
        %v563 = vunpack.c.l.b16 %v492
        %v564 = vunpack.c.l.b16 %v493
        %v565 = vunpack.c.l.b16 %v494
        %v566 = vunpack.c.l.b16 %v495
        %v567 = vunpack.c.l.b16 %v496
        %v568 = vunpack.c.l.b16 %v497
        %v569 = vunpack.c.l.b16 %v498
        %v570 = vunpack.c.l.b16 %v499
        %v571 = vunpack.c.l.b16 %v500
        %v572 = vpack.c.b16 %v541, %v540
        %v573 = vpack.c.b16 %v543, %v542
        %v574 = vpack.c.b16 %v545, %v544
        %v575 = vpack.c.b16 %v547, %v546
        %v576 = vpack.c.b16 %v549, %v548
        %v577 = vpack.c.b16 %v551, %v550
        %v578 = vpack.c.b16 %v553, %v552
        %v579 = vpack.c.b16 %v555, %v554
        %v580 = vpack.c.b16 %v557, %v556
        %v581 = vpack.c.b16 %v559, %v558
        %v582 = vpack.c.b16 %v561, %v560
        %v583 = vpack.c.b16 %v563, %v562
        %v584 = vpack.c.b16 %v565, %v564
        %v585 = vpack.c.b16 %v567, %v566
        %v586 = vpack.c.b16 %v569, %v568
        %v587 = vpack.c.b16 %v571, %v570
        %604 = vmatprep.subr.bf16.mxu0 0
        %605 = vmatpush1.bf16.msra.mxu0 %v572
        %606 = vmatprep.subr.bf16.mxu0 0
        %607 = vmatpush1.bf16.msra.mxu0 %v573
        %608 = vmatprep.subr.bf16.mxu0 0
        %609 = vmatpush1.bf16.msra.mxu0 %v574
        %610 = vmatprep.subr.bf16.mxu0 0
        %611 = vmatpush1.bf16.msra.mxu0 %v575
        %612 = vmatprep.subr.bf16.mxu0 0
        %613 = vmatpush1.bf16.msra.mxu0 %v576
        %614 = vmatprep.subr.bf16.mxu0 0
        %615 = vmatpush1.bf16.msra.mxu0 %v577
        %616 = vmatprep.subr.bf16.mxu0 0
        %617 = vmatpush1.bf16.msra.mxu0 %v578
        %618 = vmatprep.subr.bf16.mxu0 0
        %619 = vmatpush1.bf16.msra.mxu0 %v579
        %620 = vmatprep.subr.bf16.mxu0 0
        %621 = vmatpush1.bf16.msra.mxu0 %v580
        %622 = vmatprep.subr.bf16.mxu0 0
        %623 = vmatpush1.bf16.msra.mxu0 %v581
        %624 = vmatprep.subr.bf16.mxu0 0
        %625 = vmatpush1.bf16.msra.mxu0 %v582
        %626 = vmatprep.subr.bf16.mxu0 0
        %627 = vmatpush1.bf16.msra.mxu0 %v583
        %628 = vmatprep.subr.bf16.mxu0 0
        %629 = vmatpush1.bf16.msra.mxu0 %v584
        %630 = vmatprep.subr.bf16.mxu0 0
        %631 = vmatpush1.bf16.msra.mxu0 %v585
        %632 = vmatprep.subr.bf16.mxu0 0
        %633 = vmatpush1.bf16.msra.mxu0 %v586
        %634 = vmatprep.subr.bf16.mxu0 0
        %635 = vmatpush1.bf16.msra.mxu0 %v587
        %636 = vmatprep.mubr.bf16.mxu0 %v505
        %637 = vmatmul.mubr.bf16.gmra.mrb[0].mxu0 %v504
        %v638 = vpop.f32.mrb[0].mxu0
        %v639 = vadd.f32 0.0, %v638
        %v640 = vpop.f32.mrb[0].mxu0
        %v641 = vpop.f32.mrb[0].mxu0
        %v642 = vpop.f32.mrb[0].mxu0
        %643 = vdwg.mxu0
        %v644 = vld [vmem:[%s454] sm:$0x1]
        %v645 = vld [vmem:[%s457] sm:$0x1]
        %v646 = vld [vmem:[%s406] sm:$0x1]
        %v647 = vmul.f32 %v644, 1.442695
        %v648 = vpow.pop %v647
        %v650 = vlaneseq
        %v651 = vshrl.u32 %v650, 7
        %v652 = vsub.s32 0, %v651
        %v653 = vrot.slane %v648, %v652
        %v655 = vmul.f32 %v639, %v653
        %v657 = vlaneseq
        %v658 = vshrl.u32 %v657, 7
        %v659 = vsub.s32 0, %v658
        %v660 = vrot.slane %v645, %v659
        %v662 = vadd.f32 %v655, %v660
        %v663 = vmax.f32 %v662, 0.0
        %v665 = vlaneseq
        %v666 = vshrl.u32 %v665, 7
        %v667 = vsub.s32 0, %v666
        %v668 = vrot.slane %v646, %v667
        %v670 = vadd.f32 %v639, %v668
        %v671 = vmax.f32 %v670, 0.0
        %vm672 = vcmp.gt.f32.partialorder %v670, 0.0
        %vm673 = vcmp.lt.f32.partialorder %v670, 0.0
        %v674 = vmul.f32 %v663, 0.5
        %v675 = vsel %vm673, 0.0, %v674
        %v676 = vsel %vm672, %v663, %v675
        %v677 = vld [vmem:[#allocation3] sm:$0x1]
        %v678 = vrot.slane %v671, 4
        %v679 = vadd.f32 %v671, %v678
        %v680 = vrot.slane %v679, 2
        %v681 = vadd.f32 %v679, %v680
        %v682 = vrot.slane %v681, 1
        %v683 = vadd.f32 %v681, %v682
        %v684 = vadd.f32 %v677, %v683
        %685 = vst [vmem:[#allocation3] sm:$0x1] %v684
        %v686 = vpack.c.bf16 %v671, %v676
        %v687 = vld [vmem:[#allocation2] sm:$0xff]
        %v688 = vld [vmem:[#allocation2 + $0x8] sm:$0xff]
        %v689 = vld [vmem:[#allocation2 + $0x10] sm:$0xff]
        %v690 = vld [vmem:[#allocation2 + $0x18] sm:$0xff]
        %v691 = vld [vmem:[%s398] sm:$0xff]
        %v692 = vld [vmem:[%s398 + $0x8] sm:$0xff]
        %v693 = vld [vmem:[%s398 + $0x10] sm:$0xff]
        %v694 = vld [vmem:[%s398 + $0x18] sm:$0xff]
        %v695 = vld [vmem:[%s398 + $0x20] sm:$0xff]
        %v696 = vld [vmem:[%s398 + $0x28] sm:$0xff]
        %v697 = vld [vmem:[%s398 + $0x30] sm:$0xff]
        %v698 = vld [vmem:[%s398 + $0x38] sm:$0xff]
        %v699 = vld [vmem:[%s398 + $0x40] sm:$0xff]
        %v700 = vld [vmem:[%s398 + $0x48] sm:$0xff]
        %v701 = vld [vmem:[%s398 + $0x50] sm:$0xff]
        %v702 = vld [vmem:[%s398 + $0x58] sm:$0xff]
        %v703 = vld [vmem:[%s398 + $0x60] sm:$0xff]
        %v704 = vld [vmem:[%s398 + $0x68] sm:$0xff]
        %v705 = vld [vmem:[%s398 + $0x70] sm:$0xff]
        %v706 = vld [vmem:[%s398 + $0x78] sm:$0xff]
        %v723 = vunpack.c.l.b16 %v691
        %v724 = vunpack.c.h.b16 %v691
        %v725 = vunpack.c.l.b16 %v692
        %v726 = vunpack.c.h.b16 %v692
        %v727 = vunpack.c.l.b16 %v693
        %v728 = vunpack.c.h.b16 %v693
        %v729 = vunpack.c.l.b16 %v694
        %v730 = vunpack.c.h.b16 %v694
        %v731 = vunpack.c.l.b16 %v695
        %v732 = vunpack.c.h.b16 %v695
        %v733 = vunpack.c.l.b16 %v696
        %v734 = vunpack.c.h.b16 %v696
        %v735 = vunpack.c.l.b16 %v697
        %v736 = vunpack.c.h.b16 %v697
        %v737 = vunpack.c.l.b16 %v698
        %v738 = vunpack.c.h.b16 %v698
        %v739 = vunpack.c.l.b16 %v699
        %v740 = vunpack.c.h.b16 %v699
        %v741 = vunpack.c.l.b16 %v700
        %v742 = vunpack.c.h.b16 %v700
        %v743 = vunpack.c.l.b16 %v701
        %v744 = vunpack.c.h.b16 %v701
        %v745 = vunpack.c.l.b16 %v702
        %v746 = vunpack.c.h.b16 %v702
        %v747 = vunpack.c.l.b16 %v703
        %v748 = vunpack.c.h.b16 %v703
        %v749 = vunpack.c.l.b16 %v704
        %v750 = vunpack.c.h.b16 %v704
        %v751 = vunpack.c.l.b16 %v705
        %v752 = vunpack.c.h.b16 %v705
        %v753 = vunpack.c.l.b16 %v706
        %v754 = vunpack.c.h.b16 %v706
        %v755 = vpack.c.b16 %v725, %v723
        %v756 = vpack.c.b16 %v726, %v724
        %v757 = vpack.c.b16 %v729, %v727
        %v758 = vpack.c.b16 %v730, %v728
        %v759 = vpack.c.b16 %v733, %v731
        %v760 = vpack.c.b16 %v734, %v732
        %v761 = vpack.c.b16 %v737, %v735
        %v762 = vpack.c.b16 %v738, %v736
        %v763 = vpack.c.b16 %v741, %v739
        %v764 = vpack.c.b16 %v742, %v740
        %v765 = vpack.c.b16 %v745, %v743
        %v766 = vpack.c.b16 %v746, %v744
        %v767 = vpack.c.b16 %v749, %v747
        %v768 = vpack.c.b16 %v750, %v748
        %v769 = vpack.c.b16 %v753, %v751
        %v770 = vpack.c.b16 %v754, %v752
        %787 = vmatprep.subr.bf16.mxu0 %v756
        %788 = vmatpush1.bf16.msra.mxu0 %v755
        %789 = vmatprep.subr.bf16.mxu0 %v758
        %790 = vmatpush1.bf16.msra.mxu0 %v757
        %791 = vmatprep.subr.bf16.mxu0 %v760
        %792 = vmatpush1.bf16.msra.mxu0 %v759
        %793 = vmatprep.subr.bf16.mxu0 %v762
        %794 = vmatpush1.bf16.msra.mxu0 %v761
        %795 = vmatprep.subr.bf16.mxu0 %v764
        %796 = vmatpush1.bf16.msra.mxu0 %v763
        %797 = vmatprep.subr.bf16.mxu0 %v766
        %798 = vmatpush1.bf16.msra.mxu0 %v765
        %799 = vmatprep.subr.bf16.mxu0 %v768
        %800 = vmatpush1.bf16.msra.mxu0 %v767
        %801 = vmatprep.subr.bf16.mxu0 %v770
        %802 = vmatpush1.bf16.msra.mxu0 %v769
        %803 = vmatprep.subr.bf16.mxu0 0
        %804 = vmatpush1.bf16.msra.mxu0 0
        %805 = vmatprep.subr.bf16.mxu0 0
        %806 = vmatpush1.bf16.msra.mxu0 0
        %807 = vmatprep.subr.bf16.mxu0 0
        %808 = vmatpush1.bf16.msra.mxu0 0
        %809 = vmatprep.subr.bf16.mxu0 0
        %810 = vmatpush1.bf16.msra.mxu0 0
        %811 = vmatprep.subr.bf16.mxu0 0
        %812 = vmatpush1.bf16.msra.mxu0 0
        %813 = vmatprep.subr.bf16.mxu0 0
        %814 = vmatpush1.bf16.msra.mxu0 0
        %815 = vmatprep.subr.bf16.mxu0 0
        %816 = vmatpush1.bf16.msra.mxu0 0
        %817 = vmatprep.subr.bf16.mxu0 0
        %818 = vmatpush1.bf16.msra.mxu0 0
        %819 = vmatprep.mubr.bf16.mxu0 0
        %820 = vmatmul.mubr.bf16.gmra.mrb[0].mxu0 %v686
        %v821 = vpop.f32.mrb[0].mxu0
        %v822 = vadd.f32 0.0, %v821
        %v823 = vpop.f32.mrb[0].mxu0
        %v824 = vadd.f32 0.0, %v823
        %v825 = vpop.f32.mrb[0].mxu0
        %v826 = vadd.f32 0.0, %v825
        %v827 = vpop.f32.mrb[0].mxu0
        %v828 = vadd.f32 0.0, %v827
        %829 = vdwg.mxu0
        %v830 = vadd.f32 %v687, %v822
        %v831 = vadd.f32 %v688, %v824
        %v832 = vadd.f32 %v689, %v826
        %v833 = vadd.f32 %v690, %v828
        %834 = vst [vmem:[#allocation2] sm:$0xff] %v830
        %835 = vst [vmem:[#allocation2 + $0x8] sm:$0xff] %v831
        %836 = vst [vmem:[#allocation2 + $0x10] sm:$0xff] %v832
        %837 = vst [vmem:[#allocation2 + $0x18] sm:$0xff] %v833
        %p838 = scmp.eq.s32.totalorder %s25, 7
        // Predicated region
        $region77: #{tpu_custom_call.1} parent=51 // pred_check
          %p839 = pneg %p838
        $region78: #{tpu_custom_call.1} parent=51 // pred_check_branch
          %841 = sbr.rel (%p839) target = $region80
        $region79: #{tpu_custom_call.1} parent=51 // pred_region
          %v842 = vld [vmem:[%s7] sm:$0x3]
          %v843 = vld [vmem:[#allocation7] sm:$0xff]
          %v844 = vld [vmem:[#allocation7 + $0x8] sm:$0xff]
          %v845 = vld [vmem:[#allocation2] sm:$0xff]
          %v846 = vld [vmem:[#allocation2 + $0x8] sm:$0xff]
          %v847 = vld [vmem:[#allocation2 + $0x10] sm:$0xff]
          %v848 = vld [vmem:[#allocation2 + $0x18] sm:$0xff]
          %v850 = vlaneseq
          %v851 = vshrl.u32 %v850, 7
          %v852 = vsub.s32 0, %v851
          %v853 = vrot.slane %v842, %v852
          %v854 = vlaneseq
          %v855 = vshrl.u32 %v854, 7
          %v856 = vsub.s32 1, %v855
          %v857 = vrot.slane %v842, %v856
          %v860 = vadd.f32 %v845, %v853
          %v861 = vadd.f32 %v846, %v857
          %v862 = vadd.f32 %v847, %v853
          %v863 = vadd.f32 %v848, %v857
          %864 = vst [vmem:[#allocation12] sm:$0xff] %v860
          %865 = vst [vmem:[#allocation12 + $0x8] sm:$0xff] %v861
          %v866 = vsub.f32 %v860, %v843
          %v867 = vsub.f32 %v861, %v844
          %v868 = vmul.f32 %v866, %v866
          %v869 = vmul.f32 %v867, %v867
          %v870 = vadd.f32 %v868, %v869
          %871 = vadd.xlane.f32.xlu0 %v870
          %v872 = vpop.xlane.xlu0 %871
          %v873 = vrot.slane %v872, 4
          %v874 = vadd.f32 %v872, %v873
          %v875 = vrot.slane %v874, 2
          %v876 = vadd.f32 %v874, %v875
          %v877 = vrot.slane %v876, 1
          %v878 = vadd.f32 %v876, %v877
          %s879 = vtos %v878
          %s880 = smul.f32 %s879, 0.00048828125
          %v881 = vsub.f32 %v862, %v843
          %v882 = vsub.f32 %v863, %v844
          %v883 = vmul.f32 %v881, %v881
          %v884 = vmul.f32 %v882, %v882
          %v885 = vadd.f32 %v883, %v884
          %886 = vadd.xlane.f32.xlu0 %v885
          %v887 = vpop.xlane.xlu0 %886
          %v888 = vrot.slane %v887, 4
          %v889 = vadd.f32 %v887, %v888
          %v890 = vrot.slane %v889, 2
          %v891 = vadd.f32 %v889, %v890
          %v892 = vrot.slane %v891, 1
          %v893 = vadd.f32 %v891, %v892
          %s894 = vtos %v893
          %s895 = smul.f32 %s894, 0.00048828125
          %v896 = vld [vmem:[#allocation3] sm:$0x1]
          %vm897 = vcmask 1040384
          %v898 = vsel %vm897, %v896, 0.0
          %899 = vadd.xlane.f32.xlu0 %v898
          %v900 = vpop.xlane.xlu0 %899
          %v901 = vrot.slane %v900, 4
          %v902 = vadd.f32 %v900, %v901
          %v903 = vrot.slane %v902, 2
          %v904 = vadd.f32 %v902, %v903
          %v905 = vrot.slane %v904, 1
          %v906 = vadd.f32 %v904, %v905
          %s907 = vtos %v906
          %s908 = smul.f32 %s907, 0.125
          %s909 = smul.f32 %s908, 0.01
          %s910 = sadd.f32 %s880, %s909
          %s911 = sadd.f32 %s910, %s895
          %v912 = vstv %s911
          %vm913 = vcmask 0
          %914 = vst.msk [vmem:[#allocation13] sm:$0x1] %vm913, %v912
        $region80: #{tpu_custom_call.1} parent=51 // pred_fallthru
          _
        // Predicated region
        $region81: #{tpu_custom_call.1} parent=51 // pred_check
          %p915 = pneg %p231
        $region82: #{tpu_custom_call.1} parent=51 // pred_check_branch
          %917 = sbr.rel (%p915) target = $region84
        $region83: #{tpu_custom_call.1} parent=51 // pred_region
          %s919 = ssub.s32 256, 256
          %920 = vsyncadd [#allocation6], %s919
          %s922 = sshll.u32 [#allocation12], 4
          %s923 = int_to_ptr.vmem [resolvable:$true] %s922
          %925 = dma.vmem_to_hbm [thread:$0]  %s923, 256, %s8, [#allocation6]
        $region84: #{tpu_custom_call.1} parent=51 // pred_fallthru
          _
        // Predicated region
        $region85: #{tpu_custom_call.1} parent=51 // pred_check
          %p926 = pneg %p252
        $region86: #{tpu_custom_call.1} parent=51 // pred_check_branch
          %928 = sbr.rel (%p926) target = $region88
        $region87: #{tpu_custom_call.1} parent=51 // pred_region
          %s930 = ssub.s32 16, 16
          %931 = vsyncadd [#allocation14], %s930
          %s933 = sshll.u32 [#allocation13], 4
          %s934 = int_to_ptr.vmem [resolvable:$true] %s933
          %936 = dma.vmem_to_hbm [thread:$0]  %s934, 16, %s9, [#allocation14]
        $region88: #{tpu_custom_call.1} parent=51 // pred_fallthru
          _
        // Predicated region
        $region89: #{tpu_custom_call.1} parent=51 // pred_check
          %p937 = pneg %p231
        $region90: #{tpu_custom_call.1} parent=51 // pred_check_branch
          %939 = sbr.rel (%p937) target = $region92
        $region91: #{tpu_custom_call.1} parent=51 // pred_region
          %940 = dma.done [#allocation6], 256
        $region92: #{tpu_custom_call.1} parent=51 // pred_fallthru
          _
        // Predicated region
        $region93: #{tpu_custom_call.1} parent=51 // pred_check
          %p941 = pneg %p252
        $region94: #{tpu_custom_call.1} parent=51 // pred_check_branch
          %943 = sbr.rel (%p941) target = $region96
        $region95: #{tpu_custom_call.1} parent=51 // pred_region
          %944 = dma.done [#allocation14], 16
        $region96: #{tpu_custom_call.1} parent=51 // pred_fallthru
          _
      $region52: #{tpu_custom_call.1} parent=5 // pred_fallthru
        _
      %p945 = scmp.le.s32.totalorder 2, %s20
      // Predicated region
      $region97: #{tpu_custom_call.1} parent=5 // pred_check
        %p946 = pneg %p945
      $region98: #{tpu_custom_call.1} parent=5 // pred_check_branch
        %948 = sbr.rel (%p946) target = $region100
      $region99: #{tpu_custom_call.1} parent=5 // pred_region
        %s949 = ssub.s32 %s20, 2
      $region100: #{tpu_custom_call.1} parent=5 // pred_fallthru
        _
    $region6: #{tpu_custom_call.1} parent=1 // loop_footer
      %s24 = sadd.s32 1, %s20
    $region7: #{tpu_custom_call.1} parent=1 // loop_footer_branch
      %19 = sbr.rel target = $region3
    $region8: #{tpu_custom_call.1} parent=1 // loop_exit
      _
    %950 = vsyncpa [#allocation5], 1
    %s951 = scalar_lea.sflag [#allocation5], 1
    %952 = vsyncpa %s951, 1
    %953 = vsyncpa [#allocation8], 1
    %954 = vsyncpa [#allocation6], 1
    %s955 = scalar_lea.sflag [#allocation6], 1
    %956 = vsyncpa %s955, 1
    %957 = vsyncpa [#allocation14], 1

</llo_original>
